<compile_context>
chip_gen: v7x
topology: tpu7x:2x2x1
jax: 0.10.0
libtpu: 0.0.40
codegen_flags: <defaults>
</compile_context>

<pallas_src>
import jax
import jax.numpy as jnp
from jax.experimental import pallas as pl
from jax.experimental.pallas import tpu as pltpu

H_DIM = 64            # node embedding dim (module default h_dim=64)
HOUT_DIM = 128        # module default hout_dim=128
MOTIF_HEDGE_DIM = 94  # motif_hedge_dim in module __init__
N_LAYERS = 1
CLASSIFICATION = False
OUT_DIM = 2 if CLASSIFICATION else 1
ROW_TILE = 1024       # review: 1024-2048; double-buffered footprint ~1 MiB at 1024


def _round_up(x, m):
    return ((x + m - 1) // m) * m


def _choose_row_tile(m):
    """Row tile: multiple of 16 (bf16 sublane pack), target ROW_TILE, keep grid >= 2
    so dimension_semantics=('parallel',) can shard across v7x's two TensorCores."""
    tm = ROW_TILE
    while tm > 16 and _round_up(m, tm) // tm < 2:
        tm //= 2
    return tm, _round_up(m, tm)


def _softplus(x):
    # torch.nn.Softplus(beta=1): stable log1p(exp(-|x|)) + max(x, 0)
    return jnp.maximum(x, 0.0) + jnp.log1p(jnp.exp(-jnp.abs(x)))


# ---------------------------------------------------------------------------
# Pallas kernel: per-incidence gated message
#   acc = x_i @ Wx + motif_term_g          (per-motif term hoisted out of the kernel)
#   msg = sigmoid(acc[:, :64]) * softplus(acc[:, 64:])
# ---------------------------------------------------------------------------
# TODO(synk): CHGConv's source is not included in the reference file; we implement the
# standard gated CGConv-style hypergraph message (sigmoid(lin_f(z)) * softplus(lin_c(z)))
# with z = [x_i, hedge_mean, hedge_attr] and omit its optional BatchNorm layers.
def _gated_msg_kernel(xi_ref, mt_ref, wx_ref, o_ref):
    acc = jnp.dot(xi_ref[...], wx_ref[...], preferred_element_type=jnp.float32)
    acc = acc + mt_ref[...].astype(jnp.float32)          # hoisted motif term (bias folded in)
    f = acc[:, :H_DIM]
    c = acc[:, H_DIM:]
    # sigmoid via a single tanh (1 EUP op instead of exp + reciprocal); keep f32 math
    # so the same codepath is safe on v5e (no bf16 EUP) as well as v6e/v7x.
    gate = 0.5 * jnp.tanh(0.5 * f) + 0.5
    o_ref[...] = (gate * _softplus(c)).astype(o_ref.dtype)


def gated_messages(x_i, motif_term_g, wx, tm):
    """x_i: [Mp,64] bf16, motif_term_g: [Mp,128] bf16, wx: [64,128] bf16 -> [Mp,64] bf16."""
    mp = x_i.shape[0]
    grid = (mp // tm,)
    cost = pl.CostEstimate(
        flops=2 * mp * H_DIM * 2 * H_DIM,                       # single [tm,64]x[64,128] matmul
        transcendentals=3 * mp * H_DIM,                         # tanh + exp + log1p per element
        bytes_accessed=mp * (2 * H_DIM + 2 * 2 * H_DIM + 2 * H_DIM) + H_DIM * 2 * H_DIM * 2,
    )
    return pl.pallas_call(
        _gated_msg_kernel,
        out_shape=jax.ShapeDtypeStruct((mp, H_DIM), jnp.bfloat16),
        grid=grid,
        in_specs=[
            pl.BlockSpec((tm, H_DIM), lambda i: (i, 0)),            # x_i rows (streamed)
            pl.BlockSpec((tm, 2 * H_DIM), lambda i: (i, 0)),        # hoisted motif-term rows
            pl.BlockSpec((H_DIM, 2 * H_DIM), lambda i: (0, 0)),     # resident packed Wx (wf||wc)
        ],
        out_specs=pl.BlockSpec((tm, H_DIM), lambda i: (i, 0)),
        compiler_params=pltpu.CompilerParams(
            dimension_semantics=("parallel",),        # megacore / v7x 2-TC sharding
            vmem_limit_bytes=16 * 1024 * 1024,        # actual double-buffered need ~1 MiB
        ),
        cost_estimate=cost,
    )(x_i, motif_term_g, wx)


# ---------------------------------------------------------------------------
# Plain-JAX glue (gathers / segment means / parameter setup)
# ---------------------------------------------------------------------------
def segment_mean(vals, ids, num_segments):
    s = jax.ops.segment_sum(vals, ids, num_segments=num_segments)
    cnt = jax.ops.segment_sum(jnp.ones(vals.shape[0], vals.dtype), ids,
                              num_segments=num_segments)
    return s / jnp.maximum(cnt, 1.0)[:, None]


def masked_segment_mean(vals, ids, num_segments, valid):
    # valid: [rows] f32 {0,1}; padded rows contribute nothing.
    s = jax.ops.segment_sum(vals * valid[:, None], ids, num_segments=num_segments)
    cnt = jax.ops.segment_sum(valid, ids, num_segments=num_segments)
    return s / jnp.maximum(cnt, 1.0)[:, None]


def init_params(key):
    ks = jax.random.split(key, 8 + 4 * N_LAYERS)
    k_in = 2 * H_DIM + MOTIF_HEDGE_DIM  # concat(x_i, hedge_agg, hedge_attr)
    params = {
        "embed": 0.1 * jax.random.normal(ks[0], (101, H_DIM), jnp.float32),
        "w1": 0.05 * jax.random.normal(ks[1], (H_DIM, HOUT_DIM), jnp.float32),
        "b1": 0.01 * jax.random.normal(ks[2], (HOUT_DIM,), jnp.float32),
        "w2": 0.05 * jax.random.normal(ks[3], (HOUT_DIM, OUT_DIM), jnp.float32),
        "b2": 0.01 * jax.random.normal(ks[4], (OUT_DIM,), jnp.float32),
        "convs": [],
    }
    for l in range(N_LAYERS):
        kk = ks[8 + 4 * l: 8 + 4 * (l + 1)]
        params["convs"].append({
            "wf": 0.05 * jax.random.normal(kk[0], (k_in, H_DIM), jnp.float32),
            "bf": 0.01 * jax.random.normal(kk[1], (H_DIM,), jnp.float32),
            "wc": 0.05 * jax.random.normal(kk[2], (k_in, H_DIM), jnp.float32),
            "bc": 0.01 * jax.random.normal(kk[3], (H_DIM,), jnp.float32),
        })
    return params


def _pack_conv_weights(lyr):
    # wf||wc -> (222, 128), split along K into the three z components.
    W = jnp.concatenate([lyr["wf"], lyr["wc"]], axis=1)                    # (222, 128)
    wx = W[:H_DIM].astype(jnp.bfloat16)                                    # x_i slice (in-kernel)
    wa = W[H_DIM:2 * H_DIM]                                                # hedge-mean slice (hoisted, f32)
    wm = W[2 * H_DIM:]                                                     # motif-attr slice (hoisted, f32)
    b = jnp.concatenate([lyr["bf"], lyr["bc"]]).reshape(1, 2 * H_DIM)      # (1, 128) f32
    return wx, wa, wm, b


def chgcnn_forward(params, atom_z, motif_attr, hedge_index, atom_batch, num_graphs):
    # hyperedge_attrs['atom'] = embed(atomic numbers)
    x = jnp.take(params["embed"], atom_z, axis=0)             # [N, h_dim] f32
    num_motifs = motif_attr.shape[0]
    num_atoms = x.shape[0]

    M = hedge_index.shape[1]
    tm, Mp = _choose_row_tile(M)
    pad = Mp - M
    motif_idx = jnp.pad(hedge_index[0], (0, pad))              # padded with 0 (valid id)
    node_idx = jnp.pad(hedge_index[1], (0, pad))
    valid = (jnp.arange(Mp) < M).astype(jnp.float32)

    for lyr in params["convs"]:
        wx, wa, wm, b = _pack_conv_weights(lyr)
        x_i = jnp.take(x, node_idx, axis=0)                                  # [Mp, 64] f32
        hedge_agg = masked_segment_mean(x_i, motif_idx, num_motifs, valid)   # per-hyperedge mean
        # Hoisted per-motif term: computed once per motif (tiny f32 matmuls), gathered per
        # incidence as a single bf16 256 B/row stream instead of [Mp,94]+[Mp,64] streams
        # plus two extra per-row MXU matmuls in the kernel.
        motif_term = (hedge_agg @ wa + motif_attr @ wm + b).astype(jnp.bfloat16)   # [num_motifs, 128]
        motif_term_g = jnp.take(motif_term, motif_idx, axis=0)                     # [Mp, 128] bf16
        msg = gated_messages(x_i.astype(jnp.bfloat16), motif_term_g, wx, tm)       # [Mp, 64] bf16 (Pallas)
        upd = masked_segment_mean(msg.astype(jnp.float32), node_idx,               # scatter back, f32 accum
                                  num_atoms, valid)
        x = jax.nn.relu(x + upd)                                                   # conv update + .relu()

    pooled = segment_mean(x, atom_batch, num_graphs)            # scatter(..., reduce='mean')
    # Head MLP on [num_graphs, 64]: far below pallas_call launch cost -> plain jnp (per review).
    h = _softplus(pooled @ params["w1"] + params["b1"])
    out = h @ params["w2"] + params["b2"]
    if CLASSIFICATION:
        out = jax.nn.sigmoid(out)
    # TODO(synk): Dropout (classification branch) is a no-op in eval mode; omitted.
    return out


if __name__ == "__main__":
    key = jax.random.PRNGKey(0)
    k_par, k_z, k_attr, k_idx = jax.random.split(key, 4)

    num_atoms, num_motifs, num_inc, num_graphs = 12, 5, 24, 2

    params = init_params(k_par)
    atom_z = jax.random.randint(k_z, (num_atoms,), 1, 101, dtype=jnp.int32)
    motif_attr = jax.random.normal(k_attr, (num_motifs, MOTIF_HEDGE_DIM), jnp.float32)
    node_idx = jax.random.randint(k_idx, (num_inc,), 0, num_atoms, dtype=jnp.int32)
    motif_idx = (jnp.arange(num_inc, dtype=jnp.int32) % num_motifs)
    hedge_index = jnp.stack([motif_idx, node_idx])             # [2, num_inc]
    atom_batch = jnp.array([0] * 6 + [1] * 6, dtype=jnp.int32)

    out = jax.jit(chgcnn_forward, static_argnums=(5,))(
        params, atom_z, motif_attr, hedge_index, atom_batch, num_graphs)
    out = jax.block_until_ready(out)
    assert out.shape == (num_graphs, OUT_DIM)
    assert bool(jnp.all(jnp.isfinite(out)))
    print("KERNEL_OK")
</pallas_src>

<mosaic_0001>
module attributes {stable_mosaic.version = 11 : i64} {
  func.func private @main(%arg0: i32) attributes {dimension_semantics = [#tpu.dimension_semantics<core_parallel>], iteration_bounds = array<i64: 2>, tpu.core_type = #tpu.core_type<sc_scalar_subcore>, window_params = []} {
    return
  }
}

module attributes {stable_mosaic.version = 11 : i64} {
  func.func private @main(%arg0: i32) attributes {dimension_semantics = [#tpu.dimension_semantics<core_parallel>], iteration_bounds = array<i64: 2>, tpu.core_type = #tpu.core_type<sc_scalar_subcore>, window_params = []} {
    return
  }
}

module attributes {stable_mosaic.version = 11 : i64} {
  func.func @_gated_msg_kernel(%arg0: i32, %arg1: memref<16x64xbf16, #tpu.memory_space<vmem>>, %arg2: memref<16x128xbf16, #tpu.memory_space<vmem>>, %arg3: memref<64x128xbf16, #tpu.memory_space<vmem>>, %arg4: memref<16x64xbf16, #tpu.memory_space<vmem>>) attributes {dimension_semantics = [#tpu.dimension_semantics<parallel>], iteration_bounds = array<i64: 2>, scalar_prefetch = 0 : i64, scratch_operands = 0 : i64, tpu.core_type = #tpu.core_type<tc>, window_params = [{transform_indices = @transform_0, window_bounds = array<i64: 16, 64>}, {transform_indices = @transform_1, window_bounds = array<i64: 16, 128>}, {pipeline_mode = #tpu.pipeline_mode<synchronous>, transform_indices = @transform_2, window_bounds = array<i64: 64, 128>}, {transform_indices = @transform_3, window_bounds = array<i64: 16, 64>}]} {
    %c0 = arith.constant 0 : index
    %c0_0 = arith.constant 0 : index
    %0 = vector.load %arg1[%c0, %c0_0] : memref<16x64xbf16, #tpu.memory_space<vmem>>, vector<16x64xbf16>
    %c0_1 = arith.constant 0 : index
    %c0_2 = arith.constant 0 : index
    %1 = vector.load %arg3[%c0_1, %c0_2] : memref<64x128xbf16, #tpu.memory_space<vmem>>, vector<64x128xbf16>
    %cst = arith.constant dense<0.000000e+00> : vector<16x128xf32>
    %2 = tpu.matmul %0, %1, %cst {dimension_numbers = #tpu.dot_dimension_numbers<[1], [0], [0], [1], [0, 0, 1, 1], [], []>} : vector<16x64xbf16>, vector<64x128xbf16>, vector<16x128xf32> -> vector<16x128xf32>
    %c0_3 = arith.constant 0 : index
    %c0_4 = arith.constant 0 : index
    %3 = vector.load %arg2[%c0_3, %c0_4] : memref<16x128xbf16, #tpu.memory_space<vmem>>, vector<16x128xbf16>
    %4 = arith.extf %3 : vector<16x128xbf16> to vector<16x128xf32>
    %5 = arith.addf %2, %4 : vector<16x128xf32>
    %6 = vector.extract_strided_slice %5 {offsets = [0, 0], sizes = [16, 64], strides = [1, 1]} : vector<16x128xf32> to vector<16x64xf32>
    %7 = vector.extract_strided_slice %5 {offsets = [0, 64], sizes = [16, 64], strides = [1, 1]} : vector<16x128xf32> to vector<16x64xf32>
    %cst_5 = arith.constant 5.000000e-01 : f32
    %8 = vector.broadcast %cst_5 : f32 to vector<16x64xf32>
    %9 = arith.mulf %8, %6 : vector<16x64xf32>
    %10 = math.tanh %9 : vector<16x64xf32>
    %cst_6 = arith.constant 5.000000e-01 : f32
    %11 = vector.broadcast %cst_6 : f32 to vector<16x64xf32>
    %12 = arith.mulf %11, %10 : vector<16x64xf32>
    %cst_7 = arith.constant 5.000000e-01 : f32
    %13 = vector.broadcast %cst_7 : f32 to vector<16x64xf32>
    %14 = arith.addf %12, %13 : vector<16x64xf32>
    %cst_8 = arith.constant 0.000000e+00 : f32
    %15 = vector.broadcast %cst_8 : f32 to vector<16x64xf32>
    %16 = arith.maximumf %7, %15 : vector<16x64xf32>
    %17 = math.absf %7 : vector<16x64xf32>
    %cst_9 = arith.constant 0.000000e+00 : f32
    %18 = vector.broadcast %cst_9 : f32 to vector<16x64xf32>
    %19 = arith.subf %18, %17 : vector<16x64xf32>
    %20 = math.exp %19 : vector<16x64xf32>
    %21 = math.log1p %20 : vector<16x64xf32>
    %22 = arith.addf %16, %21 : vector<16x64xf32>
    %23 = arith.mulf %14, %22 : vector<16x64xf32>
    %24 = arith.truncf %23 : vector<16x64xf32> to vector<16x64xbf16>
    %c0_10 = arith.constant 0 : index
    %c0_11 = arith.constant 0 : index
    %25 = vector.load %arg4[%c0_10, %c0_11] : memref<16x64xbf16, #tpu.memory_space<vmem>>, vector<16x64xbf16>
    tpu.vector_store %arg4[%c0_10, %c0_11], %24 {strides = array<i32>} : memref<16x64xbf16, #tpu.memory_space<vmem>>, vector<16x64xbf16>,
    return
  }
  func.func @transform_0(%arg0: i32) -> (i32, i32) {
    %c0_i32 = arith.constant 0 : i32
    %c0_i32_0 = arith.constant 0 : i32
    return %arg0, %c0_i32 : i32, i32
  }
  func.func @transform_1(%arg0: i32) -> (i32, i32) {
    %c0_i32 = arith.constant 0 : i32
    %c0_i32_0 = arith.constant 0 : i32
    return %arg0, %c0_i32 : i32, i32
  }
  func.func @transform_2(%arg0: i32) -> (i32, i32) {
    %c0_i32 = arith.constant 0 : i32
    %c0_i32_0 = arith.constant 0 : i32
    %c0_i32_1 = arith.constant 0 : i32
    return %c0_i32, %c0_i32_0 : i32, i32
  }
  func.func @transform_3(%arg0: i32) -> (i32, i32) {
    %c0_i32 = arith.constant 0 : i32
    %c0_i32_0 = arith.constant 0 : i32
    return %arg0, %c0_i32 : i32, i32
  }
}

</mosaic_0001>

<llo_original>
// kernel: chgcnn_forward.1
$region0: #{chgcnn_forward.1}
  #allocation0 [shape = 'u32[]', space=smem, size = 0x4, offset = 0x4, fixed_abs, tag = 'smem constant byte address 0x4 - core index']
  #allocation1 [shape = 'u32[144,128]{1,0:T(1,128)}', space=vmem, size = 0x12000, scoped, tag = 'internal scratch']
  %s0 = inlined_call_operand.vmem [shape: bf16[32,64], index: 0, kind: input, shape index: {}]
  %s1 = inlined_call_operand.vmem [shape: bf16[32,128], index: 1, kind: input, shape index: {}]
  %s2 = inlined_call_operand.vmem [shape: bf16[64,128], index: 2, kind: input, shape index: {}]
  %s3 = inlined_call_operand.vmem [shape: bf16[32,64], index: 3, kind: output, shape index: {}]
  %s4 = sld [smem:[#allocation0]]
  $region45: #{chgcnn_forward.1} parent=0
    _
  %s6 = ssub.s32 1, %s4
  %s7 = scalar_select 0, %s6, %s4
  loop: start=0, step=1, limit=4
  $region2: #{chgcnn_forward.1} parent=0 // loop_pre_header
    _
  $region3: #{chgcnn_forward.1} parent=0 // loop_header
    %s9 = sphi 0, %s13
    %p10 = scmp.ge.s32.totalorder %s9, 4
    %s19 = sphi 0, %s21
    %s22 = sphi 0, %s19
    %s23 = sphi 0, %s22
    %s39 = sphi 0, %s23
    %s45 = sphi 0, %s47
    %s48 = sphi 0, %s45
    %s49 = sphi 0, %s48
    %s65 = sphi 0, %s49
    %s69 = sphi 0, %s69
    %s71 = sphi 0, %s69
    %s72 = sphi 0, %s71
    %s86 = sphi 0, %s72
    %s92 = sphi 0, %s94
    %s95 = sphi 0, %s92
    %s96 = sphi 0, %s95
    %s112 = sphi 0, %s96
  $region4: #{chgcnn_forward.1} parent=0 // loop_header_branch
    %12 = sbr.rel (%p10) target = $region8
  $region5: #{chgcnn_forward.1} parent=0 // loop_body
    %s14 = ssub.s32 %s9, 1
    %s15 = ssub.s32 %s9, 2
    %s16 = sadd.s32 %s9, 1
    %s17 = ssub.s32 %s9, %s16
    %p18 = scmp.eq.s32.totalorder %s17, 0
    %s20 = sadd.s32 %s19, 1
    %s21 = scalar_select %p18, %s19, %s20
    %p24 = pneg %p18
    %p25 = scmp.eq.s32.totalorder %s9, 1
    %p26 = por %p24, %p25
    %p27 = scmp.ne.s32.totalorder %s19, %s22
    %p28 = scmp.eq.s32.totalorder %s9, 0
    %p29 = por %p27, %p28
    %p30 = scmp.ne.s32.totalorder %s19, %s22
    %p31 = scmp.eq.s32.totalorder %s14, 1
    %p32 = por %p30, %p31
    %p33 = scmp.ne.s32.totalorder %s22, %s23
    %p34 = scmp.eq.s32.totalorder %s14, 0
    %p35 = por %p33, %p34
    %p36 = scmp.ne.s32.totalorder %s22, %s23
    %p37 = scmp.eq.s32.totalorder %s15, 1
    %p38 = por %p36, %p37
    %p40 = scmp.ne.s32.totalorder %s23, %s39
    %p41 = scmp.eq.s32.totalorder %s15, 0
    %p42 = por %p40, %p41
    %s43 = ssub.s32 %s9, %s16
    %p44 = scmp.eq.s32.totalorder %s43, 0
    %s46 = sadd.s32 %s45, 1
    %s47 = scalar_select %p44, %s45, %s46
    %p50 = pneg %p44
    %p51 = scmp.eq.s32.totalorder %s9, 1
    %p52 = por %p50, %p51
    %p53 = scmp.ne.s32.totalorder %s45, %s48
    %p54 = scmp.eq.s32.totalorder %s9, 0
    %p55 = por %p53, %p54
    %p56 = scmp.ne.s32.totalorder %s45, %s48
    %p57 = scmp.eq.s32.totalorder %s14, 1
    %p58 = por %p56, %p57
    %p59 = scmp.ne.s32.totalorder %s48, %s49
    %p60 = scmp.eq.s32.totalorder %s14, 0
    %p61 = por %p59, %p60
    %p62 = scmp.ne.s32.totalorder %s48, %s49
    %p63 = scmp.eq.s32.totalorder %s15, 1
    %p64 = por %p62, %p63
    %p66 = scmp.ne.s32.totalorder %s49, %s65
    %p67 = scmp.eq.s32.totalorder %s15, 0
    %p68 = por %p66, %p67
    %s70 = sadd.s32 %s69, 1
    %p73 = scmp.eq.s32.totalorder %s9, 1
    %p74 = scmp.ne.s32.totalorder %s69, %s71
    %p75 = scmp.eq.s32.totalorder %s9, 0
    %p76 = por %p74, %p75
    %p77 = scmp.ne.s32.totalorder %s69, %s71
    %p78 = scmp.eq.s32.totalorder %s14, 1
    %p79 = por %p77, %p78
    %p80 = scmp.ne.s32.totalorder %s71, %s72
    %p81 = scmp.eq.s32.totalorder %s14, 0
    %p82 = por %p80, %p81
    %p83 = scmp.ne.s32.totalorder %s71, %s72
    %p84 = scmp.eq.s32.totalorder %s15, 1
    %p85 = por %p83, %p84
    %p87 = scmp.ne.s32.totalorder %s72, %s86
    %p88 = scmp.eq.s32.totalorder %s15, 0
    %p89 = por %p87, %p88
    %s90 = ssub.s32 %s9, %s16
    %p91 = scmp.eq.s32.totalorder %s90, 0
    %s93 = sadd.s32 %s92, 1
    %s94 = scalar_select %p91, %s92, %s93
    %p97 = pneg %p91
    %p98 = scmp.eq.s32.totalorder %s9, 1
    %p99 = por %p97, %p98
    %p100 = scmp.ne.s32.totalorder %s92, %s95
    %p101 = scmp.eq.s32.totalorder %s9, 0
    %p102 = por %p100, %p101
    %p103 = scmp.ne.s32.totalorder %s92, %s95
    %p104 = scmp.eq.s32.totalorder %s14, 1
    %p105 = por %p103, %p104
    %p106 = scmp.ne.s32.totalorder %s95, %s96
    %p107 = scmp.eq.s32.totalorder %s14, 0
    %p108 = por %p106, %p107
    %p109 = scmp.ne.s32.totalorder %s95, %s96
    %p110 = scmp.eq.s32.totalorder %s15, 1
    %p111 = por %p109, %p110
    %p113 = scmp.ne.s32.totalorder %s96, %s112
    %p114 = scmp.eq.s32.totalorder %s15, 0
    %p115 = por %p113, %p114
    %p116 = scmp.le.s32.totalorder 1, %s9
    %p117 = scmp.lt.s32.totalorder %s9, 3
    %p118 = pnand %p116, %p117
    %p119 = pneg %p118
    // Predicated region
    $region9: #{chgcnn_forward.1} parent=5 // pred_check
      _
    $region10: #{chgcnn_forward.1} parent=5 // pred_check_branch
      %121 = sbr.rel (%p118) target = $region12
    $region11: #{chgcnn_forward.1} parent=5 // pred_region
      %s122 = ssub.s32 %s9, 1
      // Predicated region
      $region13: #{chgcnn_forward.1} parent=11 // pred_check
        %p123 = pneg %p82
      $region14: #{chgcnn_forward.1} parent=11 // pred_check_branch
        %125 = sbr.rel (%p123) target = $region16
      $region15: #{chgcnn_forward.1} parent=11 // pred_region
        _
      $region16: #{chgcnn_forward.1} parent=11 // pred_fallthru
        _
    $region12: #{chgcnn_forward.1} parent=5 // pred_fallthru
      _
    %p126 = scmp.lt.s32.totalorder %s9, 2
    // Predicated region
    $region17: #{chgcnn_forward.1} parent=5 // pred_check
      %p127 = pneg %p126
    $region18: #{chgcnn_forward.1} parent=5 // pred_check_branch
      %129 = sbr.rel (%p127) target = $region20
    $region19: #{chgcnn_forward.1} parent=5 // pred_region
      // Predicated region
      $region21: #{chgcnn_forward.1} parent=19 // pred_check
        %p130 = pneg %p29
      $region22: #{chgcnn_forward.1} parent=19 // pred_check_branch
        %132 = sbr.rel (%p130) target = $region24
      $region23: #{chgcnn_forward.1} parent=19 // pred_region
        %s133 = smul.u32 2, %s9
        %p134 = scmp.lt.s32.totalorder %s133, 3
        %s135 = scalar_select %p134, %s133, 3
        %s136 = smul.addr %s135, 4
        %s137 = scalar_lea.vmem %s0, %s136
        %s138 = smul.u32 2, %s9
      $region24: #{chgcnn_forward.1} parent=19 // pred_fallthru
        _
      // Predicated region
      $region25: #{chgcnn_forward.1} parent=19 // pred_check
        %p139 = pneg %p55
      $region26: #{chgcnn_forward.1} parent=19 // pred_check_branch
        %141 = sbr.rel (%p139) target = $region28
      $region27: #{chgcnn_forward.1} parent=19 // pred_region
        %s142 = smul.u32 2, %s9
        %p143 = scmp.lt.s32.totalorder %s142, 3
        %s144 = scalar_select %p143, %s142, 3
        %s145 = smul.addr %s144, 4
        %s146 = scalar_lea.vmem %s1, %s145
        %s147 = smul.u32 2, %s9
      $region28: #{chgcnn_forward.1} parent=19 // pred_fallthru
        _
    $region20: #{chgcnn_forward.1} parent=5 // pred_fallthru
      _
    %p148 = scmp.le.s32.totalorder 1, %s9
    %p149 = scmp.lt.s32.totalorder %s9, 3
    %p150 = pnand %p148, %p149
    %p151 = pneg %p150
    // Predicated region
    $region29: #{chgcnn_forward.1} parent=5 // pred_check
      _
    $region30: #{chgcnn_forward.1} parent=5 // pred_check_branch
      %153 = sbr.rel (%p150) target = $region32
    $region31: #{chgcnn_forward.1} parent=5 // pred_region
      %s154 = ssub.s32 %s9, 1
      %s155 = smul.u32 2, %s14
      %p156 = scmp.lt.s32.totalorder %s155, 3
      %s157 = scalar_select %p156, %s155, 3
      %s158 = smul.addr %s157, 4
      %s159 = scalar_lea.vmem %s0, %s158
      %p160 = pneg %p35
      %p161 = pneg %p32
      %s162 = smul.u32 2, %s14
      %p163 = scmp.lt.s32.totalorder %s162, 3
      %s164 = scalar_select %p163, %s162, 3
      %s165 = smul.addr %s164, 4
      %s166 = scalar_lea.vmem %s1, %s165
      %p167 = pneg %p61
      %p168 = pneg %p58
      %p169 = pneg %p82
      %p170 = pneg %p79
      %p171 = pneg %p108
      %p172 = pneg %p105
      %s173 = smul.u32 2, %s14
      %p174 = scmp.lt.s32.totalorder %s173, 3
      %s175 = scalar_select %p174, %s173, 3
      %s176 = smul.addr %s175, 4
      %s177 = scalar_lea.vmem %s3, %s176
      %s178 = smul.u32 2, %s14
      %p179 = scmp.lt.s32.totalorder %s178, 3
      %s180 = scalar_select %p179, %s178, 3
      %s181 = smul.addr %s180, 4
      %s182 = scalar_lea.vmem %s0, %s181
      %s183 = smul.u32 2, %s14
      %s184 = smul.u32 2, %s14
      %p185 = scmp.lt.s32.totalorder %s184, 3
      %s186 = scalar_select %p185, %s184, 3
      %s187 = smul.addr %s186, 4
      %s188 = scalar_lea.vmem %s1, %s187
      %s189 = smul.u32 2, %s14
      %s190 = smul.u32 2, %s14
      %p191 = scmp.lt.s32.totalorder %s190, 3
      %s192 = scalar_select %p191, %s190, 3
      %s193 = smul.addr %s192, 4
      %s194 = scalar_lea.vmem %s3, %s193
      %s195 = smul.u32 2, %s14
      %v197 = vld [vmem:[%s182] sm:$0xf]
      %v198 = vld [vmem:[%s182 + $0x4] sm:$0xf]
      %v199 = vld [vmem:[%s2] sm:$0xf]
      %v200 = vld [vmem:[%s2 + $0x4] sm:$0xf]
      %v201 = vld [vmem:[%s2 + $0x8] sm:$0xf]
      %v202 = vld [vmem:[%s2 + $0xc] sm:$0xf]
      %v203 = vld [vmem:[%s2 + $0x10] sm:$0xf]
      %v204 = vld [vmem:[%s2 + $0x14] sm:$0xf]
      %v205 = vld [vmem:[%s2 + $0x18] sm:$0xf]
      %v206 = vld [vmem:[%s2 + $0x1c] sm:$0xf]
      %v207 = vld [vmem:[%s188] sm:$0xf]
      %v208 = vld [vmem:[%s188 + $0x4] sm:$0xf]
      %v209 = vunpack.c.l.bf16 %v207
      %v210 = vunpack.c.l.bf16 %v208
      %v213 = vunpack.c.l.b16 %v197
      %v214 = vunpack.c.l.b16 %v198
      %v215 = vpack.c.b16 %v214, %v213
      %v224 = vunpack.c.l.b16 %v199
      %v225 = vunpack.c.l.b16 %v200
      %v226 = vunpack.c.l.b16 %v201
      %v227 = vunpack.c.l.b16 %v202
      %v228 = vunpack.c.l.b16 %v203
      %v229 = vunpack.c.l.b16 %v204
      %v230 = vunpack.c.l.b16 %v205
      %v231 = vunpack.c.l.b16 %v206
      %v232 = vpack.c.b16 %v225, %v224
      %v233 = vpack.c.b16 %v227, %v226
      %v234 = vpack.c.b16 %v229, %v228
      %v235 = vpack.c.b16 %v231, %v230
      %vm240 = vcmask 523264
      %v242 = vsel %vm240, %v215, 0
      %244 = vmatprep.subr.bf16.mxu0 0
      %245 = vmatpush1.bf16.msra.mxu0 %v232
      %246 = vmatprep.subr.bf16.mxu0 0
      %247 = vmatpush1.bf16.msra.mxu0 %v233
      %248 = vmatprep.subr.bf16.mxu0 0
      %249 = vmatpush1.bf16.msra.mxu0 %v234
      %250 = vmatprep.subr.bf16.mxu0 0
      %251 = vmatpush1.bf16.msra.mxu0 %v235
      %252 = vmatprep.subr.bf16.mxu0 0
      %253 = vmatpush1.bf16.msra.mxu0 0
      %254 = vmatprep.subr.bf16.mxu0 0
      %255 = vmatpush1.bf16.msra.mxu0 0
      %256 = vmatprep.subr.bf16.mxu0 0
      %257 = vmatpush1.bf16.msra.mxu0 0
      %258 = vmatprep.subr.bf16.mxu0 0
      %259 = vmatpush1.bf16.msra.mxu0 0
      %260 = vmatprep.subr.bf16.mxu0 0
      %261 = vmatpush1.bf16.msra.mxu0 0
      %262 = vmatprep.subr.bf16.mxu0 0
      %263 = vmatpush1.bf16.msra.mxu0 0
      %264 = vmatprep.subr.bf16.mxu0 0
      %265 = vmatpush1.bf16.msra.mxu0 0
      %266 = vmatprep.subr.bf16.mxu0 0
      %267 = vmatpush1.bf16.msra.mxu0 0
      %268 = vmatprep.subr.bf16.mxu0 0
      %269 = vmatpush1.bf16.msra.mxu0 0
      %270 = vmatprep.subr.bf16.mxu0 0
      %271 = vmatpush1.bf16.msra.mxu0 0
      %272 = vmatprep.subr.bf16.mxu0 0
      %273 = vmatpush1.bf16.msra.mxu0 0
      %274 = vmatprep.subr.bf16.mxu0 0
      %275 = vmatpush1.bf16.msra.mxu0 0
      %276 = vmatprep.mubr.bf16.mxu0 0
      %277 = vmatmul.mubr.bf16.gmra.mrb[0].mxu0 %v242
      %v278 = vpop.f32.mrb[0].mxu0
      %v279 = vadd.f32 %v209, %v278
      %v280 = vpop.f32.mrb[0].mxu0
      %v281 = vpop.f32.mrb[0].mxu0
      %v282 = vadd.f32 %v210, %v281
      %v283 = vpop.f32.mrb[0].mxu0
      %284 = vdwg.mxu0
      %v285 = vmul.f32 %v279, 0.5
      %v286 = vmul.f32 %v282, 0.5
      %v287 = vtanh.pop %v285
      %v288 = vtanh.pop %v286
      %v289 = vmul.f32 %v287, 0.5
      %v290 = vmul.f32 %v288, 0.5
      %v291 = vadd.f32 %v289, 0.5
      %v292 = vadd.f32 %v290, 0.5
      %v293 = vmax.f32 %v279, 0.0
      %v294 = vmax.f32 %v282, 0.0
      %v295 = vand.u32 2147483647, %v279
      %v296 = vand.u32 2147483647, %v282
      %v297 = vsub.f32 0.0, %v295
      %v298 = vsub.f32 0.0, %v296
      %v299 = vmul.f32 %v297, 1.442695
      %v300 = vpow.pop %v299
      %v301 = vmul.f32 %v298, 1.442695
      %v302 = vpow.pop %v301
      %v303 = vadd.f32 %v300, 1.0
      %v304 = vlog2.pop %v303
      %v305 = vmul.f32 %v304, 0.6931472
      %v306 = vmul.f32 -0.5, %v300
      %v307 = vadd.f32 %v306, 1.0
      %v308 = vmul.f32 %v307, %v300
      %v309 = vand.u32 2147483647, %v300
      %vm310 = vcmp.lt.f32.partialorder %v309, 0.0004427343
      %v311 = vsel %vm310, %v308, %v305
      %v312 = vadd.f32 %v302, 1.0
      %v313 = vlog2.pop %v312
      %v314 = vmul.f32 %v313, 0.6931472
      %v315 = vmul.f32 -0.5, %v302
      %v316 = vadd.f32 %v315, 1.0
      %v317 = vmul.f32 %v316, %v302
      %v318 = vand.u32 2147483647, %v302
      %vm319 = vcmp.lt.f32.partialorder %v318, 0.0004427343
      %v320 = vsel %vm319, %v317, %v314
      %v321 = vadd.f32 %v293, %v311
      %v322 = vadd.f32 %v294, %v320
      %325 = vrot.lane.b32.xlu0 %v321, 64
      %v326 = vpop.permute.xlu0 %325
      %327 = vrot.lane.b32.xlu0 %v322, 64
      %v328 = vpop.permute.xlu0 %327
      %v331 = vmul.f32 %v291, %v326
      %v332 = vmul.f32 %v292, %v328
      %v333 = vpack.c.bf16 %v332, %v331
      %v335 = vunpack.c.l.b16 %v333
      %v336 = vunpack.c.h.b16 %v333
      %v337 = vpack.c.b16 %v335, %v335
      %v338 = vpack.c.b16 %v336, %v336
      %vm341 = vcmask 519168
      %342 = vst.msk [vmem:[%s194] sm:$0xf] %vm341, %v337
      %343 = vst.msk [vmem:[%s194 + $0x4] sm:$0xf] %vm341, %v338
      %s344 = smul.u32 2, %s14
      %p345 = scmp.lt.s32.totalorder %s344, 3
      %s346 = scalar_select %p345, %s344, 3
      %s347 = smul.addr %s346, 4
      %s348 = scalar_lea.vmem %s3, %s347
      // Predicated region
      $region33: #{chgcnn_forward.1} parent=31 // pred_check
        %p349 = pneg %p105
      $region34: #{chgcnn_forward.1} parent=31 // pred_check_branch
        %351 = sbr.rel (%p349) target = $region36
      $region35: #{chgcnn_forward.1} parent=31 // pred_region
        %s352 = smul.u32 2, %s14
      $region36: #{chgcnn_forward.1} parent=31 // pred_fallthru
        _
    $region32: #{chgcnn_forward.1} parent=5 // pred_fallthru
      _
    %p353 = scmp.le.s32.totalorder 2, %s9
    // Predicated region
    $region37: #{chgcnn_forward.1} parent=5 // pred_check
      %p354 = pneg %p353
    $region38: #{chgcnn_forward.1} parent=5 // pred_check_branch
      %356 = sbr.rel (%p354) target = $region40
    $region39: #{chgcnn_forward.1} parent=5 // pred_region
      %s357 = ssub.s32 %s9, 2
      // Predicated region
      $region41: #{chgcnn_forward.1} parent=39 // pred_check
        %p358 = pneg %p111
      $region42: #{chgcnn_forward.1} parent=39 // pred_check_branch
        %360 = sbr.rel (%p358) target = $region44
      $region43: #{chgcnn_forward.1} parent=39 // pred_region
        %s361 = smul.u32 2, %s15
        %p362 = scmp.lt.s32.totalorder %s361, 3
        %s363 = scalar_select %p362, %s361, 3
        %s364 = smul.addr %s363, 4
        %s365 = scalar_lea.vmem %s3, %s364
      $region44: #{chgcnn_forward.1} parent=39 // pred_fallthru
        _
    $region40: #{chgcnn_forward.1} parent=5 // pred_fallthru
      _
  $region6: #{chgcnn_forward.1} parent=0 // loop_footer
    %s13 = sadd.s32 1, %s9
  $region7: #{chgcnn_forward.1} parent=0 // loop_footer_branch
    %8 = sbr.rel target = $region3
  $region8: #{chgcnn_forward.1} parent=0 // loop_exit
    _

</llo_original>
